<compile_context>
chip_gen: v6e
topology: v6e:2x2x1
jax: 0.10.0
libtpu: 0.0.40
codegen_flags: <defaults>
</compile_context>

<pallas_src>
import math

import jax
import jax.numpy as jnp
from jax import lax
from jax.experimental import pallas as pl
from jax.experimental.pallas import tpu as pltpu


def _cdiv(a, b):
    return -(-a // b)


def _round_up(n, m):
    return _cdiv(n, m) * m


def _vmem_capacity_bytes():
    """Per-TensorCore VMEM capacity; conservative fallback if query fails."""
    try:
        info = pltpu.get_tpu_info()
        cap = int(getattr(info, "vmem_capacity_bytes", 0))
        if cap > 0:
            return cap
    except Exception:
        pass
    return 64 << 20  # v7x per-core VMEM (smallest across generations)


def _vmem_estimate(BB, Tp, Fp, tn, in_bpe, out_bpe, w_bufs):
    """Bytes of VMEM this kernel needs per grid step (incl. pipeline buffers)."""
    x_blk = 2 * BB * Tp * Fp * in_bpe          # double-buffered activations
    w_blk = w_bufs * Fp * tn * in_bpe          # weight tile (1 buf if resident)
    pos_blk = w_bufs * Tp * tn * 4             # positional embedding tile
    tok_blk = 2 * BB * Tp * tn * out_bpe       # double-buffered token output
    mean_blk = 2 * BB * tn * 4                 # double-buffered mean output
    y_f32 = BB * Tp * tn * 4                   # in-kernel f32 intermediate
    cast = BB * Tp * tn * out_bpe              # cast copy before tok store
    scratch = 2 << 20                          # compiler-internal scratch
    return x_blk + w_blk + pos_blk + tok_blk + mean_blk + y_f32 + cast + scratch


def _choose_tiling(B, Tp, Fp, H, in_bpe, out_bpe, budget):
    """Pick (batch block BB, hidden tile tn, weight buffer count)."""
    BB = max(1, min(B, _cdiv(256, Tp)))        # target ~256 MXU rows per step
    h_full = _round_up(H, 128)
    cands = [h_full] + [t for t in (1024, 512, 256, 128) if t < h_full]
    for cand in cands:
        bufs = 1 if cand == h_full else 2      # resident weight -> single buffer
        if _vmem_estimate(BB, Tp, Fp, cand, in_bpe, out_bpe, bufs) <= budget:
            return BB, cand, bufs
    # Even the smallest H tile is too big at the target BB -> shrink batch block.
    tn = cands[-1]
    w_bufs = 1 if tn == h_full else 2
    while BB > 1 and _vmem_estimate(BB, Tp, Fp, tn, in_bpe, out_bpe, w_bufs) > budget:
        BB = _cdiv(BB, 2)
    # TODO(synk): if Fp alone is too large for VMEM, add an F (contraction) grid
    # axis with an f32 accumulator instead of only shrinking BB / tn.
    return BB, tn, w_bufs


def ct_projector_forward(x, w_t, pos, num_tokens, *,
                         matmul_dtype=jnp.bfloat16, token_dtype=None):
    """Replicates CTProjector.forward.

    x   : (B, feat_dim) or (B, N, feat_dim)
    w_t : (feat_dim, hidden_dim)      -- reduce.weight transposed
    pos : (1, num_tokens, hidden_dim)
    returns (img_emb (B, hidden_dim), tokens (B, num_tokens, hidden_dim))
    """
    emb_dtype = x.dtype
    out_dtype = emb_dtype if token_dtype is None else token_dtype

    if x.ndim == 2:
        x = x[:, None, :]
    B, N, Fd = x.shape
    H = w_t.shape[1]
    T = num_tokens

    # Token-count adjustment (index selection / tiling) — plain JAX glue.
    if N > T:
        idx = jnp.linspace(0, N - 1, T).astype(jnp.int32)   # .long() truncates
        x = x[:, idx]
    elif N < T:
        repeat = math.ceil(T / N)
        x = jnp.tile(x, (1, repeat, 1))[:, :T]
    # TODO(synk): fuse this gather/tile + pad + cast into the kernel via
    # PrefetchScalarGridSpec(num_scalar_prefetch=1) + pl.Element on the token
    # dim to save one full HBM pass over the activations.

    in_bpe = jnp.dtype(matmul_dtype).itemsize
    out_bpe = jnp.dtype(out_dtype).itemsize
    sub = 32 // in_bpe                         # sublane pack: 8 (f32) / 16 (bf16)
    Tp = _round_up(T, sub)                     # keeps in-kernel reshape a no-op
    Fp = _round_up(Fd, 128)

    cap = _vmem_capacity_bytes()
    budget = int(cap * 0.85)
    BB, tn, w_bufs = _choose_tiling(B, Tp, Fp, H, in_bpe, out_bpe, budget)
    Hp = _round_up(H, tn)
    nb = _cdiv(B, BB)
    nh = Hp // tn
    B_pad = nb * BB

    est = _vmem_estimate(BB, Tp, Fp, tn, in_bpe, out_bpe, w_bufs)
    if est > (16 << 20):
        vmem_limit = int(min(max(est, 32 << 20), int(0.9 * cap)))
    else:
        vmem_limit = None

    # Zero-pad: batch -> B_pad, tokens -> Tp, feat -> Fp, hidden -> Hp.
    # Zero pads leave the matmul, token sum and L2 norm unchanged.
    x_p = jnp.pad(x, ((0, B_pad - B), (0, Tp - T), (0, Fp - Fd))).astype(matmul_dtype)
    w_p = jnp.pad(w_t, ((0, Fp - Fd), (0, Hp - H))).astype(matmul_dtype)
    pos_p = jnp.pad(pos.reshape(T, H), ((0, Tp - T), (0, Hp - H))).astype(jnp.float32)

    inv_t = 1.0 / float(T)

    def kernel(x_ref, w_ref, pos_ref, tok_ref, mean_ref):
        # x_ref   : (BB, Tp, Fp)   matmul dtype
        # w_ref   : (Fp, tn)       matmul dtype
        # pos_ref : (Tp, tn)       f32
        # tok_ref : (BB, Tp, tn)   token output block (masked partial tails)
        # mean_ref: (BB, 1,  tn)   per-H-tile token mean (f32)
        bb, tp, fp = x_ref.shape
        tnk = w_ref.shape[1]
        # Merge (BB, Tp) into one M axis: Tp % sublane_pack == 0 -> layout no-op.
        x2 = x_ref[...].reshape(bb * tp, fp)
        y = jnp.dot(x2, w_ref[...], preferred_element_type=jnp.float32)
        y = y.reshape(bb, tp, tnk) + pos_ref[...][None]
        tok_ref[...] = y.astype(tok_ref.dtype)
        # Padded token rows are exactly zero (x pad + pos pad), so sum * 1/T_real
        # equals the true token mean.
        mean_ref[...] = (jnp.sum(y, axis=1, keepdims=True) * inv_t
                         ).astype(mean_ref.dtype)

    # Single-buffer the grid-invariant weight / pos when they are not H-tiled.
    res_kw = dict(pipeline_mode=pl.Buffered(1)) if w_bufs == 1 else {}
    in_specs = [
        pl.BlockSpec((BB, Tp, Fp), lambda b, h: (b, 0, 0)),
        pl.BlockSpec((Fp, tn), lambda b, h: (0, h), **res_kw),
        pl.BlockSpec((Tp, tn), lambda b, h: (0, h), **res_kw),
    ]
    # Outputs are written at their TRUE shapes (B, T, H): tail blocks along the
    # batch / token / hidden dims are partial and masked, so there is no
    # post-call slice (no second HBM pass over the token tensor).
    out_specs = [
        pl.BlockSpec((BB, Tp, tn), lambda b, h: (b, 0, h)),
        pl.BlockSpec((BB, 1, tn), lambda b, h: (b, 0, h)),
    ]

    tok, mean = pl.pallas_call(
        kernel,
        out_shape=(
            jax.ShapeDtypeStruct((B, T, H), out_dtype),
            jax.ShapeDtypeStruct((B, 1, H), jnp.float32),
        ),
        grid_spec=pltpu.PrefetchScalarGridSpec(
            num_scalar_prefetch=0,
            grid=(nb, nh),
            in_specs=in_specs,
            out_specs=out_specs,
        ),
        compiler_params=pltpu.CompilerParams(
            # TODO(synk): on v7x use pltpu.CORE_PARALLEL on the batch axis (2 TCs).
            dimension_semantics=("parallel", "parallel"),
            vmem_limit_bytes=vmem_limit),
    )(x_p, w_p, pos_p)

    # Tiny (B, H) epilogue in plain JAX: mean is already computed per H tile in
    # the kernel; here only the L2 normalize (F.normalize, eps=1e-12) remains.
    m = mean[:, 0, :]                                       # (B, H), f32
    ss = jnp.sum(m * m, axis=-1, keepdims=True)
    img_emb = (m * lax.rsqrt(jnp.maximum(ss, 1e-24))).astype(emb_dtype)
    return img_emb, tok


def init_params(key, feat_dim, hidden_dim, num_tokens):
    """Deterministic synthetic init mirroring nn.Linear / nn.Parameter shapes."""
    k_w, k_pos = jax.random.split(key)
    bound = 1.0 / math.sqrt(feat_dim)
    w = jax.random.uniform(k_w, (hidden_dim, feat_dim), jnp.float32, -bound, bound)
    w_t = w.T                                               # (feat_dim, hidden_dim)
    pos = jax.random.normal(k_pos, (1, num_tokens, hidden_dim), jnp.float32) * 0.02
    return w_t, pos


if __name__ == "__main__":
    B, N, FEAT, HIDDEN, NUM_TOKENS = 2, 40, 32, 32, 16

    key = jax.random.PRNGKey(0)
    k_x, k_p = jax.random.split(key)
    x = jax.random.normal(k_x, (B, N, FEAT), jnp.float32)
    w_t, pos = init_params(k_p, FEAT, HIDDEN, NUM_TOKENS)

    # Pure-JAX reference (same semantics as the PyTorch forward).
    idx = jnp.linspace(0, N - 1, NUM_TOKENS).astype(jnp.int32)
    x_sel = x[:, idx]
    ref_tok = jnp.einsum("btf,fh->bth", x_sel, w_t) + pos
    ref_emb = ref_tok.mean(axis=1)
    ref_emb = ref_emb / jnp.maximum(
        jnp.linalg.norm(ref_emb, axis=-1, keepdims=True), 1e-12)

    # f32 matmul path: tight parity with the reference.
    emb32, tok32 = ct_projector_forward(x, w_t, pos, NUM_TOKENS,
                                        matmul_dtype=jnp.float32)
    jax.block_until_ready((emb32, tok32))
    assert tok32.shape == (B, NUM_TOKENS, HIDDEN)
    assert emb32.shape == (B, HIDDEN)
    assert jnp.allclose(tok32, ref_tok, atol=1e-5, rtol=1e-5)
    assert jnp.allclose(emb32, ref_emb, atol=1e-5, rtol=1e-5)

    # bf16 MXU path (default, perf config): loose tolerance for input rounding.
    img_emb, tokens = ct_projector_forward(x, w_t, pos, NUM_TOKENS)
    jax.block_until_ready((img_emb, tokens))
    assert img_emb.shape == (B, HIDDEN)
    assert tokens.shape == (B, NUM_TOKENS, HIDDEN)
    assert jnp.allclose(tokens, ref_tok, atol=3e-2, rtol=3e-2)
    assert jnp.allclose(img_emb, ref_emb, atol=3e-2, rtol=3e-2)

    print("KERNEL_OK")
</pallas_src>

<mosaic_0001>
module attributes {stable_mosaic.version = 11 : i64} {
  func.func @kernel(%arg0: i32, %arg1: i32, %arg2: memref<2x16x128xf32, #tpu.memory_space<vmem>>, %arg3: memref<128x128xf32, #tpu.memory_space<vmem>>, %arg4: memref<16x128xf32, #tpu.memory_space<vmem>>, %arg5: memref<2x16x128xf32, #tpu.memory_space<vmem>>, %arg6: memref<2x1x128xf32, #tpu.memory_space<vmem>>) attributes {dimension_semantics = [#tpu.dimension_semantics<parallel>, #tpu.dimension_semantics<parallel>], iteration_bounds = array<i64: 1, 1>, scalar_prefetch = 0 : i64, scratch_operands = 0 : i64, tpu.core_type = #tpu.core_type<tc>, window_params = [{transform_indices = @transform_0, window_bounds = array<i64: 2, 16, 128>}, {pipeline_mode = #tpu.pipeline_mode<synchronous>, transform_indices = @transform_1, window_bounds = array<i64: 128, 128>}, {pipeline_mode = #tpu.pipeline_mode<synchronous>, transform_indices = @transform_2, window_bounds = array<i64: 16, 128>}, {transform_indices = @transform_3, window_bounds = array<i64: 2, 16, 128>}, {transform_indices = @transform_4, window_bounds = array<i64: 2, 1, 128>}]} {
    %c0 = arith.constant 0 : index
    %c0_0 = arith.constant 0 : index
    %c0_1 = arith.constant 0 : index
    %0 = vector.load %arg2[%c0, %c0_0, %c0_1] : memref<2x16x128xf32, #tpu.memory_space<vmem>>, vector<2x16x128xf32>
    %1 = vector.shape_cast %0 : vector<2x16x128xf32> to vector<32x128xf32>
    %c0_2 = arith.constant 0 : index
    %c0_3 = arith.constant 0 : index
    %2 = vector.load %arg3[%c0_2, %c0_3] : memref<128x128xf32, #tpu.memory_space<vmem>>, vector<128x128xf32>
    %cst = arith.constant dense<0.000000e+00> : vector<32x128xf32>
    %3 = tpu.matmul %1, %2, %cst {dimension_numbers = #tpu.dot_dimension_numbers<[1], [0], [0], [1], [0, 0, 1, 1], [], []>} : vector<32x128xf32>, vector<128x128xf32>, vector<32x128xf32> -> vector<32x128xf32>
    %4 = vector.shape_cast %3 : vector<32x128xf32> to vector<2x16x128xf32>
    %c0_4 = arith.constant 0 : index
    %c0_5 = arith.constant 0 : index
    %5 = vector.load %arg4[%c0_4, %c0_5] : memref<16x128xf32, #tpu.memory_space<vmem>>, vector<16x128xf32>
    %6 = vector.shape_cast %5 : vector<16x128xf32> to vector<1x16x128xf32>
    %7 = vector.broadcast %6 : vector<1x16x128xf32> to vector<2x16x128xf32>
    %8 = arith.addf %4, %7 : vector<2x16x128xf32>
    %c0_6 = arith.constant 0 : index
    %c0_7 = arith.constant 0 : index
    %c0_8 = arith.constant 0 : index
    %9 = vector.load %arg5[%c0_6, %c0_7, %c0_8] : memref<2x16x128xf32, #tpu.memory_space<vmem>>, vector<2x16x128xf32>
    tpu.vector_store %arg5[%c0_6, %c0_7, %c0_8], %8 {strides = array<i32>} : memref<2x16x128xf32, #tpu.memory_space<vmem>>, vector<2x16x128xf32>,
    %cst_9 = arith.constant dense<0.000000e+00> : vector<2x128xf32>
    %10 = vector.multi_reduction <add>, %8, %cst_9 [1] : vector<2x16x128xf32> to vector<2x128xf32>
    %11 = vector.shape_cast %10 : vector<2x128xf32> to vector<2x1x128xf32>
    %cst_10 = arith.constant 6.250000e-02 : f32
    %12 = vector.broadcast %cst_10 : f32 to vector<2x1x128xf32>
    %13 = arith.mulf %11, %12 : vector<2x1x128xf32>
    %c0_11 = arith.constant 0 : index
    %c0_12 = arith.constant 0 : index
    %c0_13 = arith.constant 0 : index
    %14 = vector.load %arg6[%c0_11, %c0_12, %c0_13] : memref<2x1x128xf32, #tpu.memory_space<vmem>>, vector<2x1x128xf32>
    tpu.vector_store %arg6[%c0_11, %c0_12, %c0_13], %13 {strides = array<i32>} : memref<2x1x128xf32, #tpu.memory_space<vmem>>, vector<2x1x128xf32>,
    return
  }
  func.func @transform_0(%arg0: i32, %arg1: i32) -> (i32, i32, i32) {
    %c0_i32 = arith.constant 0 : i32
    %c0_i32_0 = arith.constant 0 : i32
    %c0_i32_1 = arith.constant 0 : i32
    return %arg0, %c0_i32, %c0_i32_0 : i32, i32, i32
  }
  func.func @transform_1(%arg0: i32, %arg1: i32) -> (i32, i32) {
    %c0_i32 = arith.constant 0 : i32
    %c0_i32_0 = arith.constant 0 : i32
    return %c0_i32, %arg1 : i32, i32
  }
  func.func @transform_2(%arg0: i32, %arg1: i32) -> (i32, i32) {
    %c0_i32 = arith.constant 0 : i32
    %c0_i32_0 = arith.constant 0 : i32
    return %c0_i32, %arg1 : i32, i32
  }
  func.func @transform_3(%arg0: i32, %arg1: i32) -> (i32, i32, i32) {
    %c0_i32 = arith.constant 0 : i32
    %c0_i32_0 = arith.constant 0 : i32
    return %arg0, %c0_i32, %arg1 : i32, i32, i32
  }
  func.func @transform_4(%arg0: i32, %arg1: i32) -> (i32, i32, i32) {
    %c0_i32 = arith.constant 0 : i32
    %c0_i32_0 = arith.constant 0 : i32
    return %arg0, %c0_i32, %arg1 : i32, i32, i32
  }
}

</mosaic_0001>

<llo_original>
// kernel: tpu_custom_call.1
$region0: #{tpu_custom_call.1}
  #allocation0 [shape = 'u32[]', space=smem, size = 0x4, offset = 0x4, fixed_abs, tag = 'smem constant byte address 0x4 - core index']
  #allocation1 [shape = 'u32[144,128]{1,0:T(1,128)}', space=vmem, size = 0x12000, scoped, tag = 'internal scratch']
  %s0 = inlined_call_operand.hbm [shape: f32[2,16,128], index: 0, kind: input, shape index: {}]
  %s1 = inlined_call_operand.hbm [shape: f32[128,128], index: 1, kind: input, shape index: {}]
  %s2 = inlined_call_operand.hbm [shape: f32[16,128], index: 2, kind: input, shape index: {}]
  %s3 = inlined_call_operand.hbm [shape: f32[2,16,32], index: 3, kind: output, shape index: {0}]
  %s4 = inlined_call_operand.hbm [shape: f32[2,1,32], index: 4, kind: output, shape index: {1}]
  %5 = xla_tuple %s3, %s4
  %s6 = sld [smem:[#allocation0]]
  $region42: #{tpu_custom_call.1} parent=0
    _
  %s8 = ssub.s32 1, %s6
  %s9 = scalar_select 0, %s8, %s6
  $region1: #{tpu_custom_call.1} parent=0
    #allocation2 [shape = 'u8[16384]{0}', space=vmem, size = 0x4000, scoped, tag = 'input window, operand 0, single buffered']
    #allocation3 [shape = 's32[1]{0}', space=sflag, size = 0x4, scoped, tag = 'scoped memory for tpu_custom_call.1']
    #allocation4 [shape = 's32[1]{0}', space=sflag, size = 0x4, scoped, tag = 'scoped memory for tpu_custom_call.1']
    #allocation5 [shape = 'u8[65536]{0}', space=vmem, size = 0x10000, scoped, tag = 'input window, operand 1, single buffered']
    #allocation6 [shape = 's32[1]{0}', space=sflag, size = 0x4, scoped, tag = 'scoped memory for tpu_custom_call.1']
    #allocation7 [shape = 'u8[8192]{0}', space=vmem, size = 0x2000, scoped, tag = 'input window, operand 2, single buffered']
    #allocation8 [shape = 'u8[16384]{0}', space=vmem, size = 0x4000, scoped, tag = 'output window, operand 0, single buffered']
    #allocation9 [shape = 'u8[1024]{0}', space=vmem, size = 0x400, scoped, tag = 'output window, operand 1, single buffered']
    #allocation10 [shape = 's32[1]{0}', space=sflag, size = 0x4, scoped, tag = 'scoped memory for tpu_custom_call.1']
    %10 = vsyncpa [#allocation3], 0
    %11 = vsyncpa [#allocation6], 0
    %12 = vsyncpa [#allocation4], 0
    %13 = vsyncpa [#allocation10], 0
    // Predicated region
    $region2: #{tpu_custom_call.1} parent=1 // pred_check
      _
    $region3: #{tpu_custom_call.1} parent=1 // pred_check_branch
      %15 = sbr.rel (0) target = $region5
    $region4: #{tpu_custom_call.1} parent=1 // pred_region
      %s17 = ssub.s32 512, 512
      %18 = vsyncadd [#allocation3], %s17
      %s19 = sshll.u32 [#allocation2], 4
      %s20 = int_to_ptr.vmem [resolvable:$true] %s19
      %25 = dma.hbm_to_vmem [thread:$0]  %s0, 512, %s20, [#allocation3], 128, 128, 8
    $region5: #{tpu_custom_call.1} parent=1 // pred_fallthru
      _
    // Predicated region
    $region6: #{tpu_custom_call.1} parent=1 // pred_check
      _
    $region7: #{tpu_custom_call.1} parent=1 // pred_check_branch
      %27 = sbr.rel (0) target = $region9
    $region8: #{tpu_custom_call.1} parent=1 // pred_region
      %s29 = ssub.s32 2048, 2048
      %30 = vsyncadd [#allocation6], %s29
      %s31 = sshll.u32 [#allocation5], 4
      %s32 = int_to_ptr.vmem [resolvable:$true] %s31
      %37 = dma.hbm_to_vmem [thread:$0]  %s1, 2048, %s32, [#allocation6], 128, 128, 8
    $region9: #{tpu_custom_call.1} parent=1 // pred_fallthru
      _
    // Predicated region
    $region10: #{tpu_custom_call.1} parent=1 // pred_check
      _
    $region11: #{tpu_custom_call.1} parent=1 // pred_check_branch
      %39 = sbr.rel (0) target = $region13
    $region12: #{tpu_custom_call.1} parent=1 // pred_region
      %s41 = ssub.s32 256, 256
      %42 = vsyncadd [#allocation6], %s41
      %s43 = sshll.u32 [#allocation7], 4
      %s44 = int_to_ptr.vmem [resolvable:$true] %s43
      %49 = dma.hbm_to_vmem [thread:$0]  %s2, 256, %s44, [#allocation6], 128, 128, 8
    $region13: #{tpu_custom_call.1} parent=1 // pred_fallthru
      _
    // Predicated region
    $region14: #{tpu_custom_call.1} parent=1 // pred_check
      _
    $region15: #{tpu_custom_call.1} parent=1 // pred_check_branch
      %51 = sbr.rel (0) target = $region17
    $region16: #{tpu_custom_call.1} parent=1 // pred_region
      %52 = dma.done [#allocation3], 512
    $region17: #{tpu_custom_call.1} parent=1 // pred_fallthru
      _
    // Predicated region
    $region18: #{tpu_custom_call.1} parent=1 // pred_check
      _
    $region19: #{tpu_custom_call.1} parent=1 // pred_check_branch
      %54 = sbr.rel (0) target = $region21
    $region20: #{tpu_custom_call.1} parent=1 // pred_region
      %55 = dma.done [#allocation6], 2048
    $region21: #{tpu_custom_call.1} parent=1 // pred_fallthru
      _
    // Predicated region
    $region22: #{tpu_custom_call.1} parent=1 // pred_check
      _
    $region23: #{tpu_custom_call.1} parent=1 // pred_check_branch
      %57 = sbr.rel (0) target = $region25
    $region24: #{tpu_custom_call.1} parent=1 // pred_region
      %58 = dma.done [#allocation6], 256
    $region25: #{tpu_custom_call.1} parent=1 // pred_fallthru
      _
    %v59 = vld [vmem:[#allocation2] sm:$0xff]
    %v60 = vld [vmem:[#allocation2 + $0x8] sm:$0xff]
    %v61 = vld [vmem:[#allocation2 + $0x10] sm:$0xff]
    %v62 = vld [vmem:[#allocation2 + $0x18] sm:$0xff]
    %v63 = vld [vmem:[#allocation5] sm:$0xff]
    %v64 = vld [vmem:[#allocation5 + $0x8] sm:$0xff]
    %v65 = vld [vmem:[#allocation5 + $0x10] sm:$0xff]
    %v66 = vld [vmem:[#allocation5 + $0x18] sm:$0xff]
    %v67 = vld [vmem:[#allocation5 + $0x20] sm:$0xff]
    %v68 = vld [vmem:[#allocation5 + $0x28] sm:$0xff]
    %v69 = vld [vmem:[#allocation5 + $0x30] sm:$0xff]
    %v70 = vld [vmem:[#allocation5 + $0x38] sm:$0xff]
    %v71 = vld [vmem:[#allocation5 + $0x40] sm:$0xff]
    %v72 = vld [vmem:[#allocation5 + $0x48] sm:$0xff]
    %v73 = vld [vmem:[#allocation5 + $0x50] sm:$0xff]
    %v74 = vld [vmem:[#allocation5 + $0x58] sm:$0xff]
    %v75 = vld [vmem:[#allocation5 + $0x60] sm:$0xff]
    %v76 = vld [vmem:[#allocation5 + $0x68] sm:$0xff]
    %v77 = vld [vmem:[#allocation5 + $0x70] sm:$0xff]
    %v78 = vld [vmem:[#allocation5 + $0x78] sm:$0xff]
    %79 = vmatprep.subr.mxu0 0.0
    %80 = vmatpush1.msra.mxu0 %v78
    %81 = vmatprep.subr.mxu0 0.0
    %82 = vmatpush1.msra.mxu0 %v77
    %83 = vmatprep.subr.mxu0 0.0
    %84 = vmatpush1.msra.mxu0 %v76
    %85 = vmatprep.subr.mxu0 0.0
    %86 = vmatpush1.msra.mxu0 %v75
    %87 = vmatprep.subr.mxu0 0.0
    %88 = vmatpush1.msra.mxu0 %v74
    %89 = vmatprep.subr.mxu0 0.0
    %90 = vmatpush1.msra.mxu0 %v73
    %91 = vmatprep.subr.mxu0 0.0
    %92 = vmatpush1.msra.mxu0 %v72
    %93 = vmatprep.subr.mxu0 0.0
    %94 = vmatpush1.msra.mxu0 %v71
    %95 = vmatprep.subr.mxu0 0.0
    %96 = vmatpush1.msra.mxu0 %v70
    %97 = vmatprep.subr.mxu0 0.0
    %98 = vmatpush1.msra.mxu0 %v69
    %99 = vmatprep.subr.mxu0 0.0
    %100 = vmatpush1.msra.mxu0 %v68
    %101 = vmatprep.subr.mxu0 0.0
    %102 = vmatpush1.msra.mxu0 %v67
    %103 = vmatprep.subr.mxu0 0.0
    %104 = vmatpush1.msra.mxu0 %v66
    %105 = vmatprep.subr.mxu0 0.0
    %106 = vmatpush1.msra.mxu0 %v65
    %107 = vmatprep.subr.mxu0 0.0
    %108 = vmatpush1.msra.mxu0 %v64
    %109 = vmatprep.subr.mxu0 0.0
    %110 = vmatpush1.msra.mxu0 %v63
    %111 = vmatprep.subr.mxu0 0.0
    %112 = vmatpush2.msra.mxu0 0.0
    %113 = vmatprep.subr.mxu0 0.0
    %114 = vmatpush2.msra.mxu0 0.0
    %115 = vmatprep.subr.mxu0 0.0
    %116 = vmatpush2.msra.mxu0 0.0
    %117 = vmatprep.subr.mxu0 0.0
    %118 = vmatpush2.msra.mxu0 0.0
    %119 = vmatprep.subr.mxu0 0.0
    %120 = vmatpush2.msra.mxu0 0.0
    %121 = vmatprep.subr.mxu0 0.0
    %122 = vmatpush2.msra.mxu0 0.0
    %123 = vmatprep.subr.mxu0 0.0
    %124 = vmatpush2.msra.mxu0 0.0
    %125 = vmatprep.subr.mxu0 0.0
    %126 = vmatpush2.msra.mxu0 0.0
    %127 = vmatprep.subr.mxu0 0.0
    %128 = vmatpush2.msra.mxu0 0.0
    %129 = vmatprep.subr.mxu0 0.0
    %130 = vmatpush2.msra.mxu0 0.0
    %131 = vmatprep.subr.mxu0 0.0
    %132 = vmatpush2.msra.mxu0 0.0
    %133 = vmatprep.subr.mxu0 0.0
    %134 = vmatpush2.msra.mxu0 0.0
    %135 = vmatprep.subr.mxu0 0.0
    %136 = vmatpush2.msra.mxu0 0.0
    %137 = vmatprep.subr.mxu0 0.0
    %138 = vmatpush2.msra.mxu0 0.0
    %139 = vmatprep.subr.mxu0 0.0
    %140 = vmatpush2.msra.mxu0 0.0
    %141 = vmatprep.subr.mxu0 0.0
    %142 = vmatpush2.msra.mxu0 0.0
    %143 = vmatprep.mubr.f32.mxu0 0.0
    %144 = vmatmul.mubr.f32.gmra.mxu0 %v59
    %v145 = vpop.f32.mrf.mxu0
    %v146 = vadd.f32 0.0, %v145
    %v147 = vpop.f32.mrf.mxu0
    %148 = vmatprep.mubr.f32.mxu0 0.0
    %149 = vmatmul.mubr.f32.gmra.mxu0 %v60
    %v150 = vpop.f32.mrf.mxu0
    %v151 = vadd.f32 0.0, %v150
    %v152 = vpop.f32.mrf.mxu0
    %153 = vmatprep.mubr.f32.mxu0 0.0
    %154 = vmatmul.mubr.f32.gmra.mxu0 %v61
    %v155 = vpop.f32.mrf.mxu0
    %v156 = vadd.f32 0.0, %v155
    %v157 = vpop.f32.mrf.mxu0
    %158 = vmatprep.mubr.f32.mxu0 0.0
    %159 = vmatmul.mubr.f32.gmra.mxu0 %v62
    %v160 = vpop.f32.mrf.mxu0
    %v161 = vadd.f32 0.0, %v160
    %v162 = vpop.f32.mrf.mxu0
    %163 = vdwg.mxu0
    %v164 = vld [vmem:[#allocation7] sm:$0xff]
    %v165 = vld [vmem:[#allocation7 + $0x8] sm:$0xff]
    %v166 = vadd.f32 %v146, %v164
    %v167 = vadd.f32 %v151, %v165
    %v168 = vadd.f32 %v156, %v164
    %v169 = vadd.f32 %v161, %v165
    %170 = vst [vmem:[#allocation8] sm:$0xff] %v166
    %171 = vst [vmem:[#allocation8 + $0x8] sm:$0xff] %v167
    %172 = vst [vmem:[#allocation8 + $0x10] sm:$0xff] %v168
    %173 = vst [vmem:[#allocation8 + $0x18] sm:$0xff] %v169
    %v174 = vadd.f32 %v166, %v167
    %v175 = vrot.slane %v174, 4
    %v176 = vadd.f32 %v174, %v175
    %v177 = vrot.slane %v176, 2
    %v178 = vadd.f32 %v176, %v177
    %v179 = vrot.slane %v178, 1
    %v180 = vadd.f32 %v178, %v179
    %v181 = vadd.f32 %v168, %v169
    %v182 = vrot.slane %v181, 4
    %v183 = vadd.f32 %v181, %v182
    %v184 = vrot.slane %v183, 2
    %v185 = vadd.f32 %v183, %v184
    %v186 = vrot.slane %v185, 1
    %v187 = vadd.f32 %v185, %v186
    %v188 = vmul.f32 %v180, 0.0625
    %v189 = vmul.f32 %v187, 0.0625
    %190 = vst [vmem:[#allocation9] sm:$0x1] %v188
    %191 = vst [vmem:[#allocation9 + $0x1] sm:$0x1] %v189
    // Predicated region
    $region26: #{tpu_custom_call.1} parent=1 // pred_check
      _
    $region27: #{tpu_custom_call.1} parent=1 // pred_check_branch
      %193 = sbr.rel (0) target = $region29
    $region28: #{tpu_custom_call.1} parent=1 // pred_region
      %s195 = ssub.s32 512, 512
      %196 = vsyncadd [#allocation4], %s195
      %s197 = sshll.u32 [#allocation8], 4
      %s198 = int_to_ptr.vmem [resolvable:$true] %s197
      %203 = dma.vmem_to_hbm [thread:$0]  %s198, 512, %s3, [#allocation4], 128, 128, 8
    $region29: #{tpu_custom_call.1} parent=1 // pred_fallthru
      _
    // Predicated region
    $region30: #{tpu_custom_call.1} parent=1 // pred_check
      _
    $region31: #{tpu_custom_call.1} parent=1 // pred_check_branch
      %205 = sbr.rel (0) target = $region33
    $region32: #{tpu_custom_call.1} parent=1 // pred_region
      %s207 = ssub.s32 32, 32
      %208 = vsyncadd [#allocation10], %s207
      %s209 = sshll.u32 [#allocation9], 4
      %s210 = int_to_ptr.vmem [resolvable:$true] %s209
      %215 = dma.vmem_to_hbm [thread:$0]  %s210, 32, %s4, [#allocation10], 16, 16, 1
    $region33: #{tpu_custom_call.1} parent=1 // pred_fallthru
      _
    // Predicated region
    $region34: #{tpu_custom_call.1} parent=1 // pred_check
      _
    $region35: #{tpu_custom_call.1} parent=1 // pred_check_branch
      %217 = sbr.rel (0) target = $region37
    $region36: #{tpu_custom_call.1} parent=1 // pred_region
      %218 = dma.done [#allocation4], 512
    $region37: #{tpu_custom_call.1} parent=1 // pred_fallthru
      _
    // Predicated region
    $region38: #{tpu_custom_call.1} parent=1 // pred_check
      _
    $region39: #{tpu_custom_call.1} parent=1 // pred_check_branch
      %220 = sbr.rel (0) target = $region41
    $region40: #{tpu_custom_call.1} parent=1 // pred_region
      %221 = dma.done [#allocation10], 32
    $region41: #{tpu_custom_call.1} parent=1 // pred_fallthru
      _
    %222 = vsyncpa [#allocation3], 1
    %223 = vsyncpa [#allocation6], 1
    %224 = vsyncpa [#allocation4], 1
    %225 = vsyncpa [#allocation10], 1

</llo_original>
